<compile_context>
chip_gen: v7x
topology: tpu7x:2x2x1
jax: 0.10.0
libtpu: 0.0.40
codegen_flags: <defaults>
</compile_context>

<pallas_src>
import jax
import jax.numpy as jnp
from jax.experimental import pallas as pl
from jax.experimental.pallas import tpu as pltpu


# ----------------------------- kernels ------------------------------------


def _rpl_kernel_fused(x_ref, w_ref, b_ref, o_ref):
    """K collapsed into the block: one MXU pass + fused bias per (i, j) tile.

    x_ref: (tm, K)   block of X
    w_ref: (K, tn)   block of W.T (pre-transposed in the wrapper)
    b_ref: (1, tn)   f32 bias block
    o_ref: (tm, tn)  output block
    """
    acc = jnp.dot(x_ref[...], w_ref[...], preferred_element_type=jnp.float32)
    o_ref[...] = (acc + b_ref[...]).astype(o_ref.dtype)


def _rpl_kernel_ktiled(x_ref, w_ref, b_ref, o_ref, acc_ref):
    """K-tiled variant (large K): f32 accumulator across the K grid axis.

    x_ref: (tm, tk), w_ref: (tk, tn) [W.T layout], b_ref: (1, tn) f32,
    o_ref: (tm, tn), acc_ref: (tm, tn) f32 scratch.
    """
    k = pl.program_id(2)

    @pl.when(k == 0)
    def _():
        acc_ref[...] = jnp.zeros_like(acc_ref)

    acc_ref[...] += jnp.dot(
        x_ref[...], w_ref[...], preferred_element_type=jnp.float32
    )

    @pl.when(k == pl.num_programs(2) - 1)
    def _():
        o_ref[...] = (acc_ref[...] + b_ref[...]).astype(o_ref.dtype)


# ----------------------------- wrapper -------------------------------------


def _round_up(a, b):
    return (a + b - 1) // b * b


def _pick_tile(dim, candidates):
    """Largest candidate that divides `dim`, else full extent (valid per the
    (8,128) rule because a full-extent block is always allowed)."""
    for c in candidates:
        if dim % c == 0:
            return c
    return dim


def row_parallel_linear(
    x,
    weight,
    bias=None,
    *,
    tm=None,
    tn=None,
    tk=None,
    max_collapse_k=2048,
    weight_dtype=None,
):
    """Y = X @ W.T + b.

    x:      (..., input_size)
    weight: (output_size, input_size)   -- PyTorch layout
    bias:   (output_size,) or None
    weight_dtype: optional cast for the streamed weight (e.g. jnp.bfloat16 on
        v6e/v7x); accumulation stays f32.
    """
    orig_shape = x.shape
    K = orig_shape[-1]
    N = weight.shape[0]
    assert weight.shape[1] == K

    x2d = x.reshape(-1, K)
    M = x2d.shape[0]

    # --- tile selection -----------------------------------------------------
    if tm is None:
        tm = min(_round_up(M, 8), 256)          # never tm = M for large M
    else:
        tm = min(_round_up(tm, 8), _round_up(M, 8))
    if tn is None:
        tn = _pick_tile(N, (512, 256, 128))
    if tk is None:
        tk = _pick_tile(K, (512, 256, 128))
    assert N % tn == 0 and K % tk == 0

    # Pad M up to a tile multiple (zero rows contribute nothing; sliced off).
    M_pad = _round_up(M, tm)
    if M_pad != M:
        x2d = jnp.pad(x2d, ((0, M_pad - M), (0, 0)))

    # Pre-transpose the weight ONCE (outside the kernel) -> (K, N) layout.
    wt = weight.T
    if weight_dtype is not None:
        wt = wt.astype(weight_dtype)
        x2d = x2d.astype(weight_dtype)

    if bias is None:
        bias_f32 = jnp.zeros((1, N), jnp.float32)
    else:
        bias_f32 = bias.reshape(1, N).astype(jnp.float32)

    out_dtype = x.dtype
    compiler_params = pltpu.CompilerParams(
        dimension_semantics=("parallel", "parallel")
        if K <= max_collapse_k
        else ("parallel", "parallel", "arbitrary"),
        vmem_limit_bytes=48 * 1024 * 1024,  # fits v7x's 64 MiB physical VMEM
    )

    if K <= max_collapse_k:
        # ----- small K: no reduction grid axis, no accumulator scratch ------
        grid = (M_pad // tm, N // tn)
        out2d = pl.pallas_call(
            _rpl_kernel_fused,
            out_shape=jax.ShapeDtypeStruct((M_pad, N), out_dtype),
            grid_spec=pltpu.PrefetchScalarGridSpec(
                num_scalar_prefetch=0,
                grid=grid,
                in_specs=[
                    pl.BlockSpec((tm, K), lambda i, j: (i, 0)),   # X
                    pl.BlockSpec((K, tn), lambda i, j: (0, j)),   # W.T
                    pl.BlockSpec((1, tn), lambda i, j: (0, j)),   # bias (f32)
                ],
                out_specs=pl.BlockSpec((tm, tn), lambda i, j: (i, j)),
            ),
            compiler_params=compiler_params,
        )(x2d, wt, bias_f32)
    else:
        # ----- large K: tiled reduction with f32 accumulator -----------------
        grid = (M_pad // tm, N // tn, K // tk)
        out2d = pl.pallas_call(
            _rpl_kernel_ktiled,
            out_shape=jax.ShapeDtypeStruct((M_pad, N), out_dtype),
            grid_spec=pltpu.PrefetchScalarGridSpec(
                num_scalar_prefetch=0,
                grid=grid,
                in_specs=[
                    pl.BlockSpec((tm, tk), lambda i, j, k: (i, k)),   # X
                    pl.BlockSpec(                                     # W.T
                        (tk, tn),
                        lambda i, j, k: (k, j),
                        pipeline_mode=pl.Buffered(3),  # deeper W prefetch
                    ),
                    pl.BlockSpec((1, tn), lambda i, j, k: (0, j)),    # bias
                ],
                out_specs=pl.BlockSpec((tm, tn), lambda i, j, k: (i, j)),
                scratch_shapes=[pltpu.VMEM((tm, tn), jnp.float32)],
            ),
            compiler_params=compiler_params,
        )(x2d, wt, bias_f32)

    if M_pad != M:
        out2d = out2d[:M]

    # TODO(synk): for model-parallel world_size > 1, an all-reduce of the
    # partial products (reduce_from_model_parallel_region) would go here,
    # with the bias added only after the reduce (final_bias=True semantics).
    return out2d.reshape(*orig_shape[:-1], N)


# ----------------------------- test ----------------------------------------


if __name__ == "__main__":
    # Small shapes consistent with the module's forward.
    batch, seq = 2, 8
    input_size, output_size = 256, 128

    key = jax.random.PRNGKey(0)
    kx, kw = jax.random.split(key)

    x = jax.random.normal(kx, (batch, seq, input_size), dtype=jnp.float32)
    # unscaled_init_method(0.02): normal(mean=0, std=0.02)
    weight = 0.02 * jax.random.normal(
        kw, (output_size, input_size), dtype=jnp.float32
    )
    # bias is zero-initialized in the PyTorch module.
    bias = jnp.zeros((output_size,), dtype=jnp.float32)

    ref = jnp.einsum("bsk,nk->bsn", x, weight) + bias

    # Path 1: K collapsed (default for K=256).
    out = jax.block_until_ready(row_parallel_linear(x, weight, bias))
    assert out.shape == (batch, seq, output_size)
    assert jnp.allclose(out, ref, atol=1e-4, rtol=1e-4)

    # Path 2: force the K-tiled accumulator path (exercises the reduction).
    out_k = jax.block_until_ready(
        row_parallel_linear(x, weight, bias, tk=128, max_collapse_k=128)
    )
    assert jnp.allclose(out_k, ref, atol=1e-4, rtol=1e-4)

    print("KERNEL_OK")
</pallas_src>

<mosaic_0001>
module attributes {stable_mosaic.version = 11 : i64} {
  func.func @_rpl_kernel_fused(%arg0: i32, %arg1: i32, %arg2: memref<16x256xf32, #tpu.memory_space<vmem>>, %arg3: memref<256x128xf32, #tpu.memory_space<vmem>>, %arg4: memref<1x128xf32, #tpu.memory_space<vmem>>, %arg5: memref<16x128xf32, #tpu.memory_space<vmem>>) attributes {dimension_semantics = [#tpu.dimension_semantics<parallel>, #tpu.dimension_semantics<parallel>], iteration_bounds = array<i64: 1, 1>, scalar_prefetch = 0 : i64, scratch_operands = 0 : i64, tpu.core_type = #tpu.core_type<tc>, window_params = [{transform_indices = @transform_0, window_bounds = array<i64: 16, 256>}, {transform_indices = @transform_1, window_bounds = array<i64: 256, 128>}, {transform_indices = @transform_2, window_bounds = array<i64: 1, 128>}, {transform_indices = @transform_3, window_bounds = array<i64: 16, 128>}]} {
    %c0 = arith.constant 0 : index
    %c0_0 = arith.constant 0 : index
    %0 = vector.load %arg2[%c0, %c0_0] : memref<16x256xf32, #tpu.memory_space<vmem>>, vector<16x256xf32>
    %c0_1 = arith.constant 0 : index
    %c0_2 = arith.constant 0 : index
    %1 = vector.load %arg3[%c0_1, %c0_2] : memref<256x128xf32, #tpu.memory_space<vmem>>, vector<256x128xf32>
    %cst = arith.constant dense<0.000000e+00> : vector<16x128xf32>
    %2 = tpu.matmul %0, %1, %cst {dimension_numbers = #tpu.dot_dimension_numbers<[1], [0], [0], [1], [0, 0, 1, 1], [], []>} : vector<16x256xf32>, vector<256x128xf32>, vector<16x128xf32> -> vector<16x128xf32>
    %c0_3 = arith.constant 0 : index
    %c0_4 = arith.constant 0 : index
    %3 = vector.load %arg4[%c0_3, %c0_4] : memref<1x128xf32, #tpu.memory_space<vmem>>, vector<1x128xf32>
    %4 = vector.broadcast %3 : vector<1x128xf32> to vector<16x128xf32>
    %5 = arith.addf %2, %4 : vector<16x128xf32>
    %c0_5 = arith.constant 0 : index
    %c0_6 = arith.constant 0 : index
    %6 = vector.load %arg5[%c0_5, %c0_6] : memref<16x128xf32, #tpu.memory_space<vmem>>, vector<16x128xf32>
    tpu.vector_store %arg5[%c0_5, %c0_6], %5 {strides = array<i32>} : memref<16x128xf32, #tpu.memory_space<vmem>>, vector<16x128xf32>,
    return
  }
  func.func @transform_0(%arg0: i32, %arg1: i32) -> (i32, i32) {
    %c0_i32 = arith.constant 0 : i32
    %c0_i32_0 = arith.constant 0 : i32
    return %arg0, %c0_i32 : i32, i32
  }
  func.func @transform_1(%arg0: i32, %arg1: i32) -> (i32, i32) {
    %c0_i32 = arith.constant 0 : i32
    %c0_i32_0 = arith.constant 0 : i32
    return %c0_i32, %arg1 : i32, i32
  }
  func.func @transform_2(%arg0: i32, %arg1: i32) -> (i32, i32) {
    %c0_i32 = arith.constant 0 : i32
    %c0_i32_0 = arith.constant 0 : i32
    return %c0_i32, %arg1 : i32, i32
  }
  func.func @transform_3(%arg0: i32, %arg1: i32) -> (i32, i32) {
    %c0_i32 = arith.constant 0 : i32
    return %arg0, %arg1 : i32, i32
  }
}

</mosaic_0001>

<llo_original>
// kernel: tpu_custom_call.1
$region0: #{tpu_custom_call.1}
  #allocation0 [shape = 'u32[]', space=smem, size = 0x4, offset = 0x4, fixed_abs, tag = 'smem constant byte address 0x4 - core index']
  #allocation1 [shape = 'u32[144,128]{1,0:T(1,128)}', space=vmem, size = 0x12000, scoped, tag = 'internal scratch']
  %s0 = inlined_call_operand.hbm [shape: f32[16,256], index: 0, kind: input, shape index: {}]
  %s1 = inlined_call_operand.hbm [shape: f32[256,128], index: 1, kind: input, shape index: {}]
  %s2 = inlined_call_operand.vmem [shape: f32[1,128], index: 2, kind: input, shape index: {}]
  %s3 = inlined_call_operand.hbm [shape: f32[16,128], index: 3, kind: output, shape index: {}]
  %s4 = sld [smem:[#allocation0]]
  $region30: #{tpu_custom_call.1} parent=0
    _
  %s6 = ssub.s32 1, %s4
  %s7 = scalar_select 0, %s6, %s4
  $region1: #{tpu_custom_call.1} parent=0
    #allocation2 [shape = 'u8[16384]{0}', space=vmem, size = 0x4000, scoped, tag = 'input window, operand 0, single buffered']
    #allocation3 [shape = 's32[1]{0}', space=sflag, size = 0x4, scoped, tag = 'scoped memory for tpu_custom_call.1']
    #allocation4 [shape = 's32[1]{0}', space=sflag, size = 0x4, scoped, tag = 'scoped memory for tpu_custom_call.1']
    #allocation5 [shape = 'u8[131072]{0}', space=vmem, size = 0x20000, scoped, tag = 'input window, operand 1, single buffered']
    #allocation6 [shape = 's32[1]{0}', space=sflag, size = 0x4, scoped, tag = 'scoped memory for tpu_custom_call.1']
    #allocation7 [shape = 'u8[8192]{0}', space=vmem, size = 0x2000, scoped, tag = 'output window, operand 0, single buffered']
    %8 = vsyncpa [#allocation3], 0
    %9 = vsyncpa [#allocation6], 0
    %10 = vsyncpa [#allocation4], 0
    // Predicated region
    $region2: #{tpu_custom_call.1} parent=1 // pred_check
      _
    $region3: #{tpu_custom_call.1} parent=1 // pred_check_branch
      %12 = sbr.rel (0) target = $region5
    $region4: #{tpu_custom_call.1} parent=1 // pred_region
      %s14 = ssub.s32 512, 512
      %15 = vsyncadd [#allocation3], %s14
      %s16 = sshll.u32 [#allocation2], 4
      %s17 = int_to_ptr.vmem [resolvable:$true] %s16
      %22 = dma.hbm_to_vmem [thread:$0]  %s0, 512, %s17, [#allocation3], 256, 256, 16
    $region5: #{tpu_custom_call.1} parent=1 // pred_fallthru
      _
    // Predicated region
    $region6: #{tpu_custom_call.1} parent=1 // pred_check
      _
    $region7: #{tpu_custom_call.1} parent=1 // pred_check_branch
      %24 = sbr.rel (0) target = $region9
    $region8: #{tpu_custom_call.1} parent=1 // pred_region
      %s26 = ssub.s32 4096, 4096
      %27 = vsyncadd [#allocation6], %s26
      %s28 = sshll.u32 [#allocation5], 4
      %s29 = int_to_ptr.vmem [resolvable:$true] %s28
      %34 = dma.hbm_to_vmem [thread:$0]  %s1, 4096, %s29, [#allocation6], 128, 128, 8
    $region9: #{tpu_custom_call.1} parent=1 // pred_fallthru
      _
    // Predicated region
    $region10: #{tpu_custom_call.1} parent=1 // pred_check
      _
    $region11: #{tpu_custom_call.1} parent=1 // pred_check_branch
      %36 = sbr.rel (0) target = $region13
    $region12: #{tpu_custom_call.1} parent=1 // pred_region
      _
    $region13: #{tpu_custom_call.1} parent=1 // pred_fallthru
      _
    // Predicated region
    $region14: #{tpu_custom_call.1} parent=1 // pred_check
      _
    $region15: #{tpu_custom_call.1} parent=1 // pred_check_branch
      %38 = sbr.rel (0) target = $region17
    $region16: #{tpu_custom_call.1} parent=1 // pred_region
      %39 = dma.done [#allocation3], 512
    $region17: #{tpu_custom_call.1} parent=1 // pred_fallthru
      _
    // Predicated region
    $region18: #{tpu_custom_call.1} parent=1 // pred_check
      _
    $region19: #{tpu_custom_call.1} parent=1 // pred_check_branch
      %41 = sbr.rel (0) target = $region21
    $region20: #{tpu_custom_call.1} parent=1 // pred_region
      %42 = dma.done [#allocation6], 4096
    $region21: #{tpu_custom_call.1} parent=1 // pred_fallthru
      _
    %v43 = vld [vmem:[#allocation2] sm:$0xff]
    %v44 = vld [vmem:[#allocation2 + $0x8] sm:$0xff]
    %v45 = vld [vmem:[#allocation2 + $0x10] sm:$0xff]
    %v46 = vld [vmem:[#allocation2 + $0x18] sm:$0xff]
    %v47 = vld [vmem:[#allocation5] sm:$0xff]
    %v48 = vld [vmem:[#allocation5 + $0x8] sm:$0xff]
    %v49 = vld [vmem:[#allocation5 + $0x10] sm:$0xff]
    %v50 = vld [vmem:[#allocation5 + $0x18] sm:$0xff]
    %v51 = vld [vmem:[#allocation5 + $0x20] sm:$0xff]
    %v52 = vld [vmem:[#allocation5 + $0x28] sm:$0xff]
    %v53 = vld [vmem:[#allocation5 + $0x30] sm:$0xff]
    %v54 = vld [vmem:[#allocation5 + $0x38] sm:$0xff]
    %v55 = vld [vmem:[#allocation5 + $0x40] sm:$0xff]
    %v56 = vld [vmem:[#allocation5 + $0x48] sm:$0xff]
    %v57 = vld [vmem:[#allocation5 + $0x50] sm:$0xff]
    %v58 = vld [vmem:[#allocation5 + $0x58] sm:$0xff]
    %v59 = vld [vmem:[#allocation5 + $0x60] sm:$0xff]
    %v60 = vld [vmem:[#allocation5 + $0x68] sm:$0xff]
    %v61 = vld [vmem:[#allocation5 + $0x70] sm:$0xff]
    %v62 = vld [vmem:[#allocation5 + $0x78] sm:$0xff]
    %v63 = vld [vmem:[#allocation5 + $0x80] sm:$0xff]
    %v64 = vld [vmem:[#allocation5 + $0x88] sm:$0xff]
    %v65 = vld [vmem:[#allocation5 + $0x90] sm:$0xff]
    %v66 = vld [vmem:[#allocation5 + $0x98] sm:$0xff]
    %v67 = vld [vmem:[#allocation5 + $0xa0] sm:$0xff]
    %v68 = vld [vmem:[#allocation5 + $0xa8] sm:$0xff]
    %v69 = vld [vmem:[#allocation5 + $0xb0] sm:$0xff]
    %v70 = vld [vmem:[#allocation5 + $0xb8] sm:$0xff]
    %v71 = vld [vmem:[#allocation5 + $0xc0] sm:$0xff]
    %v72 = vld [vmem:[#allocation5 + $0xc8] sm:$0xff]
    %v73 = vld [vmem:[#allocation5 + $0xd0] sm:$0xff]
    %v74 = vld [vmem:[#allocation5 + $0xd8] sm:$0xff]
    %v75 = vld [vmem:[#allocation5 + $0xe0] sm:$0xff]
    %v76 = vld [vmem:[#allocation5 + $0xe8] sm:$0xff]
    %v77 = vld [vmem:[#allocation5 + $0xf0] sm:$0xff]
    %v78 = vld [vmem:[#allocation5 + $0xf8] sm:$0xff]
    %v79 = vld [vmem:[%s2] sm:$0x1]
    %v81 = vlaneseq
    %v82 = vshrl.u32 %v81, 7
    %v83 = vsub.s32 0, %v82
    %v84 = vrot.slane %v79, %v83
    %86 = vmatprep.subr.mxu0 0.0
    %87 = vmatpush1.msra.mxu0 %v47
    %88 = vmatprep.subr.mxu0 0.0
    %89 = vmatpush1.msra.mxu0 %v48
    %90 = vmatprep.subr.mxu0 0.0
    %91 = vmatpush1.msra.mxu0 %v49
    %92 = vmatprep.subr.mxu0 0.0
    %93 = vmatpush1.msra.mxu0 %v50
    %94 = vmatprep.subr.mxu0 0.0
    %95 = vmatpush1.msra.mxu0 %v51
    %96 = vmatprep.subr.mxu0 0.0
    %97 = vmatpush1.msra.mxu0 %v52
    %98 = vmatprep.subr.mxu0 0.0
    %99 = vmatpush1.msra.mxu0 %v53
    %100 = vmatprep.subr.mxu0 0.0
    %101 = vmatpush1.msra.mxu0 %v54
    %102 = vmatprep.subr.mxu0 0.0
    %103 = vmatpush1.msra.mxu0 %v55
    %104 = vmatprep.subr.mxu0 0.0
    %105 = vmatpush1.msra.mxu0 %v56
    %106 = vmatprep.subr.mxu0 0.0
    %107 = vmatpush1.msra.mxu0 %v57
    %108 = vmatprep.subr.mxu0 0.0
    %109 = vmatpush1.msra.mxu0 %v58
    %110 = vmatprep.subr.mxu0 0.0
    %111 = vmatpush1.msra.mxu0 %v59
    %112 = vmatprep.subr.mxu0 0.0
    %113 = vmatpush1.msra.mxu0 %v60
    %114 = vmatprep.subr.mxu0 0.0
    %115 = vmatpush1.msra.mxu0 %v61
    %116 = vmatprep.subr.mxu0 0.0
    %117 = vmatpush1.msra.mxu0 %v62
    %118 = vmatprep.subr.mxu0 0.0
    %119 = vmatpush1.msra.mxu0 %v63
    %120 = vmatprep.subr.mxu0 0.0
    %121 = vmatpush1.msra.mxu0 %v64
    %122 = vmatprep.subr.mxu0 0.0
    %123 = vmatpush1.msra.mxu0 %v65
    %124 = vmatprep.subr.mxu0 0.0
    %125 = vmatpush1.msra.mxu0 %v66
    %126 = vmatprep.subr.mxu0 0.0
    %127 = vmatpush1.msra.mxu0 %v67
    %128 = vmatprep.subr.mxu0 0.0
    %129 = vmatpush1.msra.mxu0 %v68
    %130 = vmatprep.subr.mxu0 0.0
    %131 = vmatpush1.msra.mxu0 %v69
    %132 = vmatprep.subr.mxu0 0.0
    %133 = vmatpush1.msra.mxu0 %v70
    %134 = vmatprep.subr.mxu0 0.0
    %135 = vmatpush1.msra.mxu0 %v71
    %136 = vmatprep.subr.mxu0 0.0
    %137 = vmatpush1.msra.mxu0 %v72
    %138 = vmatprep.subr.mxu0 0.0
    %139 = vmatpush1.msra.mxu0 %v73
    %140 = vmatprep.subr.mxu0 0.0
    %141 = vmatpush1.msra.mxu0 %v74
    %142 = vmatprep.subr.mxu0 0.0
    %143 = vmatpush1.msra.mxu0 %v75
    %144 = vmatprep.subr.mxu0 0.0
    %145 = vmatpush1.msra.mxu0 %v76
    %146 = vmatprep.subr.mxu0 0.0
    %147 = vmatpush1.msra.mxu0 %v77
    %148 = vmatprep.subr.mxu0 0.0
    %149 = vmatpush1.msra.mxu0 %v78
    %150 = vmatprep.mubr.f32.mxu0 %v44
    %151 = vmatmul.mubr.f32.gmra.mrb[0].mxu0 %v43
    %v152 = vpop.f32.mrb[0].mxu0
    %v153 = vadd.f32 %v84, %v152
    %v154 = vpop.f32.mrb[0].mxu0
    %155 = vmatprep.mubr.f32.mxu0 %v46
    %156 = vmatmul.mubr.f32.gmra.mrb[0].mxu0 %v45
    %v157 = vpop.f32.mrb[0].mxu0
    %v158 = vadd.f32 %v84, %v157
    %v159 = vpop.f32.mrb[0].mxu0
    %160 = vdwg.mxu0
    %161 = vst [vmem:[#allocation7] sm:$0xff] %v153
    %162 = vst [vmem:[#allocation7 + $0x8] sm:$0xff] %v158
    // Predicated region
    $region22: #{tpu_custom_call.1} parent=1 // pred_check
      _
    $region23: #{tpu_custom_call.1} parent=1 // pred_check_branch
      %164 = sbr.rel (0) target = $region25
    $region24: #{tpu_custom_call.1} parent=1 // pred_region
      %s166 = ssub.s32 256, 256
      %167 = vsyncadd [#allocation4], %s166
      %s168 = sshll.u32 [#allocation7], 4
      %s169 = int_to_ptr.vmem [resolvable:$true] %s168
      %174 = dma.vmem_to_hbm [thread:$0]  %s169, 256, %s3, [#allocation4], 128, 128, 8
    $region25: #{tpu_custom_call.1} parent=1 // pred_fallthru
      _
    // Predicated region
    $region26: #{tpu_custom_call.1} parent=1 // pred_check
      _
    $region27: #{tpu_custom_call.1} parent=1 // pred_check_branch
      %176 = sbr.rel (0) target = $region29
    $region28: #{tpu_custom_call.1} parent=1 // pred_region
      %177 = dma.done [#allocation4], 256
    $region29: #{tpu_custom_call.1} parent=1 // pred_fallthru
      _
    %178 = vsyncpa [#allocation3], 1
    %179 = vsyncpa [#allocation6], 1
    %180 = vsyncpa [#allocation4], 1

</llo_original>
